<compile_context>
chip_gen: v7x
topology: tpu7x:2x2x1
jax: 0.10.0
libtpu: 0.0.40
codegen_flags: <defaults>
</compile_context>

<pallas_src>
import functools

import jax
import jax.numpy as jnp
from jax.experimental import pallas as pl
from jax.experimental.pallas import tpu as pltpu


# ---------------------------------------------------------------------------
# Kernels
# ---------------------------------------------------------------------------

def _linear_relu_fullk_kernel(x_ref, w_ref, b_ref, o_ref, *, compute_dtype):
    """Single-step (full-K) tile: o = relu(x @ w + b).  No accumulator RMW."""
    x = x_ref[...]
    w = w_ref[...]
    if compute_dtype is not None:
        x = x.astype(compute_dtype)   # cheap VPU cast, hidden under the MXU
        w = w.astype(compute_dtype)
    y = jnp.dot(x, w, preferred_element_type=jnp.float32)
    y = y + b_ref[...].astype(jnp.float32)
    o_ref[...] = jnp.maximum(y, 0.0).astype(o_ref.dtype)


def _linear_relu_ktile_kernel(x_ref, w_ref, b_ref, o_ref, acc_ref, *, compute_dtype):
    """Fallback K-tiled kernel: f32 VMEM accumulator, epilogue on last K step."""
    k = pl.program_id(2)

    @pl.when(k == 0)
    def _zero():
        acc_ref[...] = jnp.zeros_like(acc_ref)

    x = x_ref[...]
    w = w_ref[...]
    if compute_dtype is not None:
        x = x.astype(compute_dtype)
        w = w.astype(compute_dtype)
    acc_ref[...] += jnp.dot(x, w, preferred_element_type=jnp.float32)

    @pl.when(k == pl.num_programs(2) - 1)
    def _finalize():
        y = acc_ref[...] + b_ref[...].astype(jnp.float32)
        o_ref[...] = jnp.maximum(y, 0.0).astype(o_ref.dtype)


# ---------------------------------------------------------------------------
# Tiling helpers
# ---------------------------------------------------------------------------

def _sublane_align(dtype):
    """Minimum sublane multiple for a packed dtype (f32: 8, bf16: 16, int8: 32)."""
    return max(8, 32 // jnp.dtype(dtype).itemsize)


def _pick_tile(dim, target, align):
    """Largest legal tile <= target: aligned divisor of dim, else full extent."""
    if dim <= target:
        return dim  # full-extent block is always legal
    for t in range(target, 0, -1):
        if dim % t == 0 and t % align == 0:
            return t
    return dim


def _vmem_budget_bytes():
    """Generation-aware VMEM budget (3/4 of physical; conservative fallback)."""
    try:
        cap = int(pltpu.get_tpu_info().vmem_capacity_bytes)
    except Exception:
        cap = 64 * 1024 * 1024  # v7x-safe assumption
    return (cap * 3) // 4  # ~48 MiB on v7x, ~96 MiB on v5e/v6e


# ---------------------------------------------------------------------------
# Wrapper (mirrors SequentialUnwrapper.forward)
# ---------------------------------------------------------------------------

def sequential_unwrapper(x, w, b, *, compute_dtype=jnp.bfloat16):
    """Returns (x, relu(x @ w + b)) — mirrors SequentialUnwrapper.forward.

    x: (B, IN), w: (IN, OUT) (i.e. PyTorch weight.T), b: (OUT,).
    compute_dtype: MXU input dtype (default bf16; cast happens inside the
    kernel).  Accumulation and the bias/ReLU epilogue stay in f32.  Pass
    compute_dtype=None only when numerics demand full-f32 matmul.
    """
    B, IN = x.shape
    IN_w, OUT = w.shape
    assert IN == IN_w and b.shape == (OUT,)

    out_dtype = x.dtype
    b2d = b.reshape(1, OUT)

    x_isz = jnp.dtype(x.dtype).itemsize
    w_isz = jnp.dtype(w.dtype).itemsize
    out_isz = jnp.dtype(out_dtype).itemsize

    def tile_bytes(tm_, tn_, tk_, with_acc):
        return (
            2 * tm_ * tk_ * x_isz           # double-buffered x tile
            + 2 * tk_ * tn_ * w_isz         # double-buffered W tile
            + 2 * 8 * tn_ * 4               # bias tile, sublane-padded to 8 rows
            + 2 * tm_ * tn_ * out_isz       # double-buffered output tile
            + (tm_ * tn_ * 4 if with_acc else 0)   # f32 accumulator scratch
        )

    vmem_budget = _vmem_budget_bytes()

    # ---- M tile: keep the whole batch in one block when feasible so W is
    #      streamed from HBM exactly once; otherwise a dtype-aligned divisor.
    sub_align = _sublane_align(x.dtype)
    tm = B if B <= 512 else _pick_tile(B, 512, sub_align)

    # ---- N / K tiles: prefer the largest lane-dense tn, and full-K (no
    #      accumulator) whenever it fits the VMEM budget.
    tn0 = _pick_tile(OUT, 512, 128)
    tn_candidates = [tn0]
    t = tn0
    while t % 256 == 0 and OUT % (t // 2) == 0:
        t //= 2
        tn_candidates.append(t)

    tn = tk = None
    use_fullk = False
    # Pass 1: full-K (drops the K axis, the accumulator, and both pl.when's).
    for tn_c in tn_candidates:
        if tile_bytes(tm, tn_c, IN, with_acc=False) <= vmem_budget:
            tn, tk, use_fullk = tn_c, IN, True
            break
    # Pass 2: K-tiled fallback with an f32 accumulator.
    if tn is None:
        for tn_c in tn_candidates:
            for tk_target in (1024, 512, 256, 128):
                tk_c = _pick_tile(IN, tk_target, 128)
                if tk_c < IN and tile_bytes(tm, tn_c, tk_c, True) <= vmem_budget:
                    tn, tk, use_fullk = tn_c, tk_c, False
                    break
            if tn is not None:
                break
    assert tn is not None, (
        "sequential_unwrapper: no 128-aligned tiling fits the VMEM budget for "
        f"shapes (B={B}, IN={IN}, OUT={OUT}); masked edge tiles would be needed."
    )

    # ---- v7x megacore: make sure the parallel (M, N) grid has >= 2 blocks so
    #      both TensorCores get work (no-op on single-TC v5e/v6e).
    if (B // tm) * (OUT // tn) == 1:
        if tn % 256 == 0 and OUT % (tn // 2) == 0:
            tn //= 2
        elif tm % (2 * sub_align) == 0 and B % (tm // 2) == 0:
            tm //= 2

    tile_vmem = tile_bytes(tm, tn, tk, with_acc=not use_fullk)
    vmem_limit = int(min(max(2 * tile_vmem, 1 << 20), vmem_budget))

    if use_fullk:
        grid = (B // tm, OUT // tn)
        y = pl.pallas_call(
            functools.partial(_linear_relu_fullk_kernel, compute_dtype=compute_dtype),
            out_shape=jax.ShapeDtypeStruct((B, OUT), out_dtype),
            grid=grid,
            in_specs=[
                pl.BlockSpec((tm, IN), lambda i, j: (i, 0)),
                pl.BlockSpec((IN, tn), lambda i, j: (0, j)),
                pl.BlockSpec((1, tn), lambda i, j: (0, j)),
            ],
            out_specs=pl.BlockSpec((tm, tn), lambda i, j: (i, j)),
            compiler_params=pltpu.CompilerParams(
                dimension_semantics=("parallel", "parallel"),
                vmem_limit_bytes=vmem_limit,
            ),
        )(x, w, b2d)
    else:
        grid = (B // tm, OUT // tn, IN // tk)
        y = pl.pallas_call(
            functools.partial(_linear_relu_ktile_kernel, compute_dtype=compute_dtype),
            out_shape=jax.ShapeDtypeStruct((B, OUT), out_dtype),
            grid=grid,
            in_specs=[
                pl.BlockSpec((tm, tk), lambda i, j, k: (i, k)),
                pl.BlockSpec((tk, tn), lambda i, j, k: (k, j)),
                pl.BlockSpec((1, tn), lambda i, j, k: (0, j)),
            ],
            out_specs=pl.BlockSpec((tm, tn), lambda i, j, k: (i, j)),
            scratch_shapes=[pltpu.VMEM((tm, tn), jnp.float32)],
            compiler_params=pltpu.CompilerParams(
                dimension_semantics=("parallel", "parallel", "arbitrary"),
                vmem_limit_bytes=vmem_limit,
            ),
        )(x, w, b2d)

    # SequentialUnwrapper returns the original input unchanged plus the output.
    return (x, y)


if __name__ == "__main__":
    key = jax.random.PRNGKey(0)
    k_x, k_w, k_b, k_x2, k_w2, k_b2 = jax.random.split(key, 6)

    # ---- Case 1: small shapes implied by the module (Linear(32, 128) + ReLU),
    #      full-f32 compute path (compute_dtype=None), full-K single-step grid.
    B, IN_DIM, OUT_DIM = 8, 32, 128
    x = jax.random.normal(k_x, (B, IN_DIM), dtype=jnp.float32)
    w = jax.random.normal(k_w, (IN_DIM, OUT_DIM), dtype=jnp.float32) * 0.05
    b = jax.random.normal(k_b, (OUT_DIM,), dtype=jnp.float32) * 0.05

    x_out, y = sequential_unwrapper(x, w, b, compute_dtype=None)
    jax.block_until_ready((x_out, y))
    ref = jnp.maximum(x @ w + b, 0.0)
    assert x_out.shape == x.shape and bool(jnp.allclose(x_out, x))
    assert y.shape == (B, OUT_DIM)
    assert bool(jnp.allclose(y, ref, atol=1e-5, rtol=1e-5))

    # ---- Case 2: larger shapes, default bf16 MXU compute (in-kernel cast),
    #      exercises tn-halving for the v7x 2-block guarantee (grid (1, 2)).
    B2, IN2, OUT2 = 128, 1024, 512
    x2 = jax.random.normal(k_x2, (B2, IN2), dtype=jnp.float32)
    w2 = jax.random.normal(k_w2, (IN2, OUT2), dtype=jnp.float32) * 0.02
    b2 = jax.random.normal(k_b2, (OUT2,), dtype=jnp.float32) * 0.02

    x2_out, y2 = sequential_unwrapper(x2, w2, b2)  # compute_dtype defaults to bf16
    jax.block_until_ready((x2_out, y2))
    ref2 = jnp.maximum(
        jnp.dot(
            x2.astype(jnp.bfloat16),
            w2.astype(jnp.bfloat16),
            preferred_element_type=jnp.float32,
        )
        + b2,
        0.0,
    )
    assert bool(jnp.allclose(x2_out, x2))
    assert bool(jnp.allclose(y2, ref2, atol=5e-2, rtol=5e-2))

    print("KERNEL_OK")
</pallas_src>

<mosaic_0001>
module attributes {stable_mosaic.version = 11 : i64} {
  func.func @_linear_relu_fullk_kernel(%arg0: i32, %arg1: i32, %arg2: memref<8x32xf32, #tpu.memory_space<vmem>>, %arg3: memref<32x128xf32, #tpu.memory_space<vmem>>, %arg4: memref<1x128xf32, #tpu.memory_space<vmem>>, %arg5: memref<8x128xf32, #tpu.memory_space<vmem>>) attributes {dimension_semantics = [#tpu.dimension_semantics<parallel>, #tpu.dimension_semantics<parallel>], iteration_bounds = array<i64: 1, 1>, scalar_prefetch = 0 : i64, scratch_operands = 0 : i64, tpu.core_type = #tpu.core_type<tc>, window_params = [{transform_indices = @transform_0, window_bounds = array<i64: 8, 32>}, {transform_indices = @transform_1, window_bounds = array<i64: 32, 128>}, {transform_indices = @transform_2, window_bounds = array<i64: 1, 128>}, {transform_indices = @transform_3, window_bounds = array<i64: 8, 128>}]} {
    %c0 = arith.constant 0 : index
    %c0_0 = arith.constant 0 : index
    %0 = vector.load %arg2[%c0, %c0_0] : memref<8x32xf32, #tpu.memory_space<vmem>>, vector<8x32xf32>
    %c0_1 = arith.constant 0 : index
    %c0_2 = arith.constant 0 : index
    %1 = vector.load %arg3[%c0_1, %c0_2] : memref<32x128xf32, #tpu.memory_space<vmem>>, vector<32x128xf32>
    %cst = arith.constant dense<0.000000e+00> : vector<8x128xf32>
    %2 = tpu.matmul %0, %1, %cst {dimension_numbers = #tpu.dot_dimension_numbers<[1], [0], [0], [1], [0, 0, 1, 1], [], []>} : vector<8x32xf32>, vector<32x128xf32>, vector<8x128xf32> -> vector<8x128xf32>
    %c0_3 = arith.constant 0 : index
    %c0_4 = arith.constant 0 : index
    %3 = vector.load %arg4[%c0_3, %c0_4] : memref<1x128xf32, #tpu.memory_space<vmem>>, vector<1x128xf32>
    %4 = vector.broadcast %3 : vector<1x128xf32> to vector<8x128xf32>
    %5 = arith.addf %2, %4 : vector<8x128xf32>
    %cst_5 = arith.constant 0.000000e+00 : f32
    %6 = vector.broadcast %cst_5 : f32 to vector<8x128xf32>
    %7 = arith.maximumf %5, %6 : vector<8x128xf32>
    %c0_6 = arith.constant 0 : index
    %c0_7 = arith.constant 0 : index
    %8 = vector.load %arg5[%c0_6, %c0_7] : memref<8x128xf32, #tpu.memory_space<vmem>>, vector<8x128xf32>
    tpu.vector_store %arg5[%c0_6, %c0_7], %7 {strides = array<i32>} : memref<8x128xf32, #tpu.memory_space<vmem>>, vector<8x128xf32>,
    return
  }
  func.func @transform_0(%arg0: i32, %arg1: i32) -> (i32, i32) {
    %c0_i32 = arith.constant 0 : i32
    %c0_i32_0 = arith.constant 0 : i32
    return %arg0, %c0_i32 : i32, i32
  }
  func.func @transform_1(%arg0: i32, %arg1: i32) -> (i32, i32) {
    %c0_i32 = arith.constant 0 : i32
    %c0_i32_0 = arith.constant 0 : i32
    return %c0_i32, %arg1 : i32, i32
  }
  func.func @transform_2(%arg0: i32, %arg1: i32) -> (i32, i32) {
    %c0_i32 = arith.constant 0 : i32
    %c0_i32_0 = arith.constant 0 : i32
    return %c0_i32, %arg1 : i32, i32
  }
  func.func @transform_3(%arg0: i32, %arg1: i32) -> (i32, i32) {
    %c0_i32 = arith.constant 0 : i32
    return %arg0, %arg1 : i32, i32
  }
}

</mosaic_0001>

<llo_original>
// kernel: tpu_custom_call.1
$region0: #{tpu_custom_call.1}
  #allocation0 [shape = 'u32[]', space=smem, size = 0x4, offset = 0x4, fixed_abs, tag = 'smem constant byte address 0x4 - core index']
  #allocation1 [shape = 'u32[144,128]{1,0:T(1,128)}', space=vmem, size = 0x12000, scoped, tag = 'internal scratch']
  %s0 = inlined_call_operand.hbm [shape: f32[8,32], index: 0, kind: input, shape index: {}]
  %s1 = inlined_call_operand.hbm [shape: f32[32,128], index: 1, kind: input, shape index: {}]
  %s2 = inlined_call_operand.vmem [shape: f32[1,128], index: 2, kind: input, shape index: {}]
  %s3 = inlined_call_operand.hbm [shape: f32[8,128], index: 3, kind: output, shape index: {}]
  %s4 = sld [smem:[#allocation0]]
  $region30: #{tpu_custom_call.1} parent=0
    _
  %s6 = ssub.s32 1, %s4
  %s7 = scalar_select 0, %s6, %s4
  $region1: #{tpu_custom_call.1} parent=0
    #allocation2 [shape = 'u8[4096]{0}', space=vmem, size = 0x1000, scoped, tag = 'input window, operand 0, single buffered']
    #allocation3 [shape = 's32[1]{0}', space=sflag, size = 0x4, scoped, tag = 'scoped memory for tpu_custom_call.1']
    #allocation4 [shape = 's32[1]{0}', space=sflag, size = 0x4, scoped, tag = 'scoped memory for tpu_custom_call.1']
    #allocation5 [shape = 'u8[16384]{0}', space=vmem, size = 0x4000, scoped, tag = 'input window, operand 1, single buffered']
    #allocation6 [shape = 's32[1]{0}', space=sflag, size = 0x4, scoped, tag = 'scoped memory for tpu_custom_call.1']
    #allocation7 [shape = 'u8[4096]{0}', space=vmem, size = 0x1000, scoped, tag = 'output window, operand 0, single buffered']
    %8 = vsyncpa [#allocation3], 0
    %9 = vsyncpa [#allocation6], 0
    %10 = vsyncpa [#allocation4], 0
    // Predicated region
    $region2: #{tpu_custom_call.1} parent=1 // pred_check
      _
    $region3: #{tpu_custom_call.1} parent=1 // pred_check_branch
      %12 = sbr.rel (0) target = $region5
    $region4: #{tpu_custom_call.1} parent=1 // pred_region
      %s14 = ssub.s32 128, 128
      %15 = vsyncadd [#allocation3], %s14
      %s17 = sshll.u32 [#allocation2], 4
      %s18 = int_to_ptr.vmem [resolvable:$true] %s17
      %20 = dma.hbm_to_vmem [thread:$0]  %s0, 128, %s18, [#allocation3]
    $region5: #{tpu_custom_call.1} parent=1 // pred_fallthru
      _
    // Predicated region
    $region6: #{tpu_custom_call.1} parent=1 // pred_check
      _
    $region7: #{tpu_custom_call.1} parent=1 // pred_check_branch
      %22 = sbr.rel (0) target = $region9
    $region8: #{tpu_custom_call.1} parent=1 // pred_region
      %s24 = ssub.s32 512, 512
      %25 = vsyncadd [#allocation6], %s24
      %s26 = sshll.u32 [#allocation5], 4
      %s27 = int_to_ptr.vmem [resolvable:$true] %s26
      %32 = dma.hbm_to_vmem [thread:$0]  %s1, 512, %s27, [#allocation6], 128, 128, 8
    $region9: #{tpu_custom_call.1} parent=1 // pred_fallthru
      _
    // Predicated region
    $region10: #{tpu_custom_call.1} parent=1 // pred_check
      _
    $region11: #{tpu_custom_call.1} parent=1 // pred_check_branch
      %34 = sbr.rel (0) target = $region13
    $region12: #{tpu_custom_call.1} parent=1 // pred_region
      _
    $region13: #{tpu_custom_call.1} parent=1 // pred_fallthru
      _
    // Predicated region
    $region14: #{tpu_custom_call.1} parent=1 // pred_check
      _
    $region15: #{tpu_custom_call.1} parent=1 // pred_check_branch
      %36 = sbr.rel (0) target = $region17
    $region16: #{tpu_custom_call.1} parent=1 // pred_region
      %37 = dma.done [#allocation3], 128
    $region17: #{tpu_custom_call.1} parent=1 // pred_fallthru
      _
    // Predicated region
    $region18: #{tpu_custom_call.1} parent=1 // pred_check
      _
    $region19: #{tpu_custom_call.1} parent=1 // pred_check_branch
      %39 = sbr.rel (0) target = $region21
    $region20: #{tpu_custom_call.1} parent=1 // pred_region
      %40 = dma.done [#allocation6], 512
    $region21: #{tpu_custom_call.1} parent=1 // pred_fallthru
      _
    %v41 = vld [vmem:[#allocation2] sm:$0xff]
    %v42 = vld [vmem:[#allocation5] sm:$0xff]
    %v43 = vld [vmem:[#allocation5 + $0x8] sm:$0xff]
    %v44 = vld [vmem:[#allocation5 + $0x10] sm:$0xff]
    %v45 = vld [vmem:[#allocation5 + $0x18] sm:$0xff]
    %v46 = vld [vmem:[%s2] sm:$0x1]
    %v48 = vlaneseq
    %v49 = vshrl.u32 %v48, 7
    %v50 = vsub.s32 0, %v49
    %v51 = vrot.slane %v46, %v50
    %vm53 = vcmask 261120
    %v55 = vsel %vm53, %v41, 0
    %57 = vmatprep.subr.mxu0 0.0
    %58 = vmatpush1.msra.mxu0 %v42
    %59 = vmatprep.subr.mxu0 0.0
    %60 = vmatpush1.msra.mxu0 %v43
    %61 = vmatprep.subr.mxu0 0.0
    %62 = vmatpush1.msra.mxu0 %v44
    %63 = vmatprep.subr.mxu0 0.0
    %64 = vmatpush1.msra.mxu0 %v45
    %65 = vmatprep.subr.mxu0 0.0
    %66 = vmatpush1.msra.mxu0 0.0
    %67 = vmatprep.subr.mxu0 0.0
    %68 = vmatpush1.msra.mxu0 0.0
    %69 = vmatprep.subr.mxu0 0.0
    %70 = vmatpush1.msra.mxu0 0.0
    %71 = vmatprep.subr.mxu0 0.0
    %72 = vmatpush1.msra.mxu0 0.0
    %73 = vmatprep.subr.mxu0 0.0
    %74 = vmatpush1.msra.mxu0 0.0
    %75 = vmatprep.subr.mxu0 0.0
    %76 = vmatpush1.msra.mxu0 0.0
    %77 = vmatprep.subr.mxu0 0.0
    %78 = vmatpush1.msra.mxu0 0.0
    %79 = vmatprep.subr.mxu0 0.0
    %80 = vmatpush1.msra.mxu0 0.0
    %81 = vmatprep.subr.mxu0 0.0
    %82 = vmatpush1.msra.mxu0 0.0
    %83 = vmatprep.subr.mxu0 0.0
    %84 = vmatpush1.msra.mxu0 0.0
    %85 = vmatprep.subr.mxu0 0.0
    %86 = vmatpush1.msra.mxu0 0.0
    %87 = vmatprep.subr.mxu0 0.0
    %88 = vmatpush1.msra.mxu0 0.0
    %89 = vmatprep.subr.mxu0 0.0
    %90 = vmatpush1.msra.mxu0 0.0
    %91 = vmatprep.subr.mxu0 0.0
    %92 = vmatpush1.msra.mxu0 0.0
    %93 = vmatprep.subr.mxu0 0.0
    %94 = vmatpush1.msra.mxu0 0.0
    %95 = vmatprep.subr.mxu0 0.0
    %96 = vmatpush1.msra.mxu0 0.0
    %97 = vmatprep.subr.mxu0 0.0
    %98 = vmatpush1.msra.mxu0 0.0
    %99 = vmatprep.subr.mxu0 0.0
    %100 = vmatpush1.msra.mxu0 0.0
    %101 = vmatprep.subr.mxu0 0.0
    %102 = vmatpush1.msra.mxu0 0.0
    %103 = vmatprep.subr.mxu0 0.0
    %104 = vmatpush1.msra.mxu0 0.0
    %105 = vmatprep.subr.mxu0 0.0
    %106 = vmatpush1.msra.mxu0 0.0
    %107 = vmatprep.subr.mxu0 0.0
    %108 = vmatpush1.msra.mxu0 0.0
    %109 = vmatprep.subr.mxu0 0.0
    %110 = vmatpush1.msra.mxu0 0.0
    %111 = vmatprep.subr.mxu0 0.0
    %112 = vmatpush1.msra.mxu0 0.0
    %113 = vmatprep.subr.mxu0 0.0
    %114 = vmatpush1.msra.mxu0 0.0
    %115 = vmatprep.subr.mxu0 0.0
    %116 = vmatpush1.msra.mxu0 0.0
    %117 = vmatprep.subr.mxu0 0.0
    %118 = vmatpush1.msra.mxu0 0.0
    %119 = vmatprep.subr.mxu0 0.0
    %120 = vmatpush1.msra.mxu0 0.0
    %121 = vmatprep.mubr.f32.mxu0 0.0
    %122 = vmatmul.mubr.f32.gmra.mrb[0].mxu0 %v55
    %v123 = vpop.f32.mrb[0].mxu0
    %v124 = vadd.f32 %v51, %v123
    %v125 = vpop.f32.mrb[0].mxu0
    %126 = vdwg.mxu0
    %v127 = vmax.f32 %v124, 0.0
    %128 = vst [vmem:[#allocation7] sm:$0xff] %v127
    // Predicated region
    $region22: #{tpu_custom_call.1} parent=1 // pred_check
      _
    $region23: #{tpu_custom_call.1} parent=1 // pred_check_branch
      %130 = sbr.rel (0) target = $region25
    $region24: #{tpu_custom_call.1} parent=1 // pred_region
      %s132 = ssub.s32 128, 128
      %133 = vsyncadd [#allocation4], %s132
      %s135 = sshll.u32 [#allocation7], 4
      %s136 = int_to_ptr.vmem [resolvable:$true] %s135
      %138 = dma.vmem_to_hbm [thread:$0]  %s136, 128, %s3, [#allocation4]
    $region25: #{tpu_custom_call.1} parent=1 // pred_fallthru
      _
    // Predicated region
    $region26: #{tpu_custom_call.1} parent=1 // pred_check
      _
    $region27: #{tpu_custom_call.1} parent=1 // pred_check_branch
      %140 = sbr.rel (0) target = $region29
    $region28: #{tpu_custom_call.1} parent=1 // pred_region
      %141 = dma.done [#allocation4], 128
    $region29: #{tpu_custom_call.1} parent=1 // pred_fallthru
      _
    %142 = vsyncpa [#allocation3], 1
    %143 = vsyncpa [#allocation6], 1
    %144 = vsyncpa [#allocation4], 1

</llo_original>
